<compile_context>
chip_gen: v7x
topology: tpu7x:2x2x1
jax: 0.10.0
libtpu: 0.0.40
codegen_flags: <defaults>
</compile_context>

<pallas_src>
import functools
import math

import jax
import jax.numpy as jnp
from jax import lax
from jax.experimental import pallas as pl
from jax.experimental.pallas import tpu as pltpu

BN_EPS = 1e-5  # nn.BatchNorm2d default

# Use the lane-packed path when every merged (W*C) width fits in <= 2 lane tiles
# (K/N <= 256 is a single MXU pass on v6e/v7x, two on v5e -- still free at these
# tiny channel counts where the kernel is memory-bound).
_PACKED_LANE_MAX = 256


# ----------------------------------------------------------------------------
# Generation-aware VMEM budgeting + tile-batch choice
# ----------------------------------------------------------------------------
def _vmem_limit_bytes():
    """Scoped-VMEM limit derived from the actual chip (review: don't hard-code
    a v7x-safe 32 MiB on v5e/v6e's 128 MiB parts)."""
    cap = 0
    try:
        cap = int(pltpu.get_tpu_info().vmem_capacity_bytes)
    except Exception:
        cap = 0
    if cap <= 0:
        cap = 64 * 1024 * 1024          # conservative fallback (v7x per-core)
    # ~75% of physical: ~96 MiB on v5e/v6e (128 MiB), ~48 MiB on v7x (64 MiB).
    return max(16 * 1024 * 1024, min(int(cap * 3 // 4), 96 * 1024 * 1024))


def _round_lanes(c):
    return ((int(c) + 127) // 128) * 128


def _round_sub(c, m=8):
    return ((int(c) + m - 1) // m) * m


def _cap_steps(tb, n):
    """>=4 grid steps when the batch allows it, so v7x's two TensorCores each
    get >=2 iterations of the ("parallel",) axis and can overlap DMA/compute."""
    target = min(n, 4)
    return max(1, min(tb, max(1, n // target)))


def _tile_batch_packed(n, H, WC1, WC_, WC2, k, wt_itemsize, vmem_limit):
    """Per-step VMEM footprint model for the lane-packed path.  Lane-rounds each
    array and includes double-buffered weight blocks and live f32 values."""
    rl = _round_lanes
    per_img = 4 * H * 2 * (rl(WC1) + rl(WC2))                   # x / out blocks, 2-buffered
    per_img += 4 * (H + 16) * rl(WC_)                           # zero-padded y1 scratch (f32)
    per_img += 4 * H * (rl(WC1) + 2 * rl(WC_) + 2 * rl(WC2))    # live f32 values (x, acc1/y1, acc2/y2)
    fixed = 2 * wt_itemsize * (_round_sub(WC1, 16) * rl(WC_)
                               + k * _round_sub(WC_, 16) * rl(WC2))
    fixed += 2 * 4 * 8 * 2 * (rl(WC_) + rl(WC2))                # scales / biases
    budget = (vmem_limit * 3) // 5
    tb = (budget - fixed) // per_img if budget > fixed + per_img else 1
    tb = max(1, min(int(tb), n))
    return _cap_steps(tb, n)


def _tile_batch_general(n, H, W, C1, c_, C2, k, g, pad, pada, wt_itemsize,
                        vmem_limit):
    """Footprint model for the general per-channel path (channels lane-rounded
    individually, weights and live values counted)."""
    rl = _round_lanes
    per_img = 4 * H * W * 2 * (rl(C1) + rl(C2))                 # x / out blocks, 2-buffered
    per_img += 4 * H * (W + 2 * pada) * rl(C1)                  # cv1 padded scratch (f32)
    per_img += 4 * (H + 2 * pad) * W * rl(c_)                   # cv2 padded scratch (f32)
    per_img += 4 * H * W * (rl(C1) + 2 * rl(c_) + 2 * rl(C2))   # live f32 values
    fixed = 2 * wt_itemsize * (k * _round_sub(C1, 16) * rl(c_)
                               + g * k * _round_sub(c_ // g, 16) * rl(C2 // g))
    fixed += 2 * 4 * 8 * 2 * (rl(c_) + rl(C2))
    budget = (vmem_limit * 3) // 5
    tb = (budget - fixed) // per_img if budget > fixed + per_img else 1
    tb = max(1, min(int(tb), n))
    return _cap_steps(tb, n)


# ----------------------------------------------------------------------------
# Lane-packed kernel (small W*C): one fused step per batch tile.
# ----------------------------------------------------------------------------
def _cross_conv_kernel_packed(x_ref, w1_ref, s1_ref, b1_ref, w2_ref, s2_ref,
                              b2_ref, o_ref, yp_ref, *, k, pad, add, cdt):
    # x_ref : (TB, H, W*C1)   f32   lane-dense input tile
    # w1_ref: (W*C1, W*c_)    cdt   banded: cv1 taps + 'same' padding folded in
    # w2_ref: (k, W*c_, W*C2) cdt   block-diag over W and over groups
    # s*/b* : (1, W*Cout)     f32   folded BatchNorm scale / bias, tiled over W
    # o_ref : (TB, H, W*C2)   f32   lane-dense output tile
    # yp_ref: (TB, H+16, W*c_) f32  scratch, zero-padded along H
    TB, H, WC1 = x_ref.shape
    WC2 = o_ref.shape[-1]
    WC_ = s1_ref.shape[-1]
    R = TB * H

    x = x_ref[...]                                        # (TB, H, WC1) f32

    # ---- cv1: (1,k) conv along W as ONE banded MXU matmul ----
    acc1 = jnp.dot(x.reshape(R, WC1).astype(cdt), w1_ref[...],
                   preferred_element_type=jnp.float32)    # (R, WC_)
    y1 = acc1 * s1_ref[...] + b1_ref[...]                 # folded BN
    y1 = y1 * jax.nn.sigmoid(y1)                          # SiLU (f32 epilogue)

    # ---- stage y1 into an H-padded VMEM scratch for the (k,1) conv ----
    # 8-row pad on each side keeps every *store* sublane-aligned; only the cheap
    # per-tap *reads* are unaligned.  Zeroing is redone every grid step because
    # scratch is per-core and under megacore sharding a core may never run
    # program_id==0 (a pl.when(pid==0) guard would be wrong on v7x).
    yp_ref[:, :8, :] = jnp.zeros((TB, 8, WC_), yp_ref.dtype)
    yp_ref[:, 8 + H:, :] = jnp.zeros((TB, 8, WC_), yp_ref.dtype)
    yp_ref[:, 8:8 + H, :] = y1.reshape(TB, H, WC_)
    # TODO(synk): a bf16 yp scratch would halve this (already tiny, lane-dense)
    # buffer but needs unaligned packed-sublane reads validated first.

    # ---- cv2: (k,1) conv along H, groups densified block-diagonally ----
    acc2 = jnp.zeros((R, WC2), jnp.float32)
    for t in range(k):                                    # static unroll, k small
        ys = yp_ref[:, 8 - pad + t:8 - pad + t + H, :]    # (TB, H, WC_)
        acc2 = acc2 + jnp.dot(ys.reshape(R, WC_).astype(cdt), w2_ref[t],
                              preferred_element_type=jnp.float32)
    y2 = acc2 * s2_ref[...] + b2_ref[...]                 # folded BN
    y2 = y2 * jax.nn.sigmoid(y2)                          # SiLU
    if add:                                               # fused residual
        y2 = y2 + x.reshape(R, WC1)                       # C1==C2: same (w,c) packing
    o_ref[...] = y2.reshape(TB, H, WC2).astype(o_ref.dtype)   # ONE lane-dense store


# ----------------------------------------------------------------------------
# General per-channel kernel (large channels; previously validated, unchanged).
# Channels >= ~128 are already lane-dense, so the packing trick above neither
# applies nor is needed here.
# ----------------------------------------------------------------------------
def _cross_conv_kernel_general(x_ref, w1_ref, s1_ref, b1_ref, w2_ref, s2_ref,
                               b2_ref, o_ref, xp_ref, yp_ref, *, k, pad, pada,
                               g, add, cdt):
    # x_ref : (TB, H, W, C1) f32 ; o_ref : (TB, H, W, C2) f32
    # w1_ref: (k, C1, c_) cdt ; w2_ref: (g, k, c_/g, C2/g) cdt (kept grouped)
    # xp_ref/yp_ref: f32 zero-padded VMEM scratch along W / H.
    TB, H, W, C1 = x_ref.shape
    C2 = o_ref.shape[-1]
    c_ = s1_ref.shape[-1]
    c_pg, c2_pg = c_ // g, C2 // g
    Rt = TB * H * W

    x = x_ref[...]

    # cv1: (1,k) conv along W.  pada keeps the bulk store sublane-aligned (the
    # per-tap reads are unaligned either way); the cost model accounts for it.
    xp_ref[:, :, :pada, :] = jnp.zeros((TB, H, pada, C1), xp_ref.dtype)
    xp_ref[:, :, pada + W:, :] = jnp.zeros((TB, H, pada, C1), xp_ref.dtype)
    xp_ref[:, :, pada:pada + W, :] = x

    w1 = w1_ref[...]
    acc1 = jnp.zeros((Rt, c_), jnp.float32)
    for t in range(k):
        xs = xp_ref[:, :, pada - pad + t:pada - pad + t + W, :]
        acc1 = acc1 + jnp.dot(xs.reshape(Rt, C1).astype(cdt), w1[t],
                              preferred_element_type=jnp.float32)
    y1 = acc1 * s1_ref[...] + b1_ref[...]
    y1 = y1 * jax.nn.sigmoid(y1)

    # cv2: (k,1) conv along H, groups=g.
    yp_ref[:, :pad, :, :] = jnp.zeros((TB, pad, W, c_), yp_ref.dtype)
    yp_ref[:, pad + H:, :, :] = jnp.zeros((TB, pad, W, c_), yp_ref.dtype)
    yp_ref[:, pad:pad + H, :, :] = y1.reshape(TB, H, W, c_)

    w2 = w2_ref[...]
    s2 = s2_ref[...]
    b2 = b2_ref[...]
    x_res = x.reshape(Rt, C1) if add else None
    for gi in range(g):
        acc2 = jnp.zeros((Rt, c2_pg), jnp.float32)
        for t in range(k):
            ys = yp_ref[:, t:t + H, :, gi * c_pg:(gi + 1) * c_pg]
            acc2 = acc2 + jnp.dot(ys.reshape(Rt, c_pg).astype(cdt), w2[gi, t],
                                  preferred_element_type=jnp.float32)
        y2 = acc2 * s2[:, gi * c2_pg:(gi + 1) * c2_pg] \
                  + b2[:, gi * c2_pg:(gi + 1) * c2_pg]
        y2 = y2 * jax.nn.sigmoid(y2)
        if add:
            y2 = y2 + x_res[:, gi * c2_pg:(gi + 1) * c2_pg]
        o_ref[:, :, :, gi * c2_pg:(gi + 1) * c2_pg] = (
            y2.reshape(TB, H, W, c2_pg).astype(o_ref.dtype))


# ----------------------------------------------------------------------------
# Parameter setup (deterministic, synthetic) + BatchNorm folding
# ----------------------------------------------------------------------------
def make_conv_bn_params(key, c_in, c_out, kh, kw, g):
    """Deterministic Conv2d(no bias) + BatchNorm2d (eval) parameters."""
    k_w, k_g, k_b, k_m, k_v = jax.random.split(key, 5)
    fan_in = (c_in // g) * kh * kw
    bound = 1.0 / math.sqrt(fan_in)
    weight = jax.random.uniform(k_w, (c_out, c_in // g, kh, kw),
                                jnp.float32, -bound, bound)
    gamma = jax.random.uniform(k_g, (c_out,), jnp.float32, 0.5, 1.5)
    beta = jax.random.uniform(k_b, (c_out,), jnp.float32, -0.5, 0.5)
    mean = jax.random.uniform(k_m, (c_out,), jnp.float32, -0.5, 0.5)
    var = jax.random.uniform(k_v, (c_out,), jnp.float32, 0.5, 1.5)
    return dict(weight=weight, gamma=gamma, beta=beta, mean=mean, var=var)


def fold_bn(p):
    scale = p["gamma"] / jnp.sqrt(p["var"] + BN_EPS)
    bias = p["beta"] - p["mean"] * scale
    return scale, bias


# ----------------------------------------------------------------------------
# Host-side weight packing for the lane-packed path
# ----------------------------------------------------------------------------
def _pack_w1_banded(w1_oihw, W, k, pad, dtype):
    """cv1 weight (c_, C1, 1, k) -> banded (W*C1, W*c_): folds the k taps of the
    (1,k) conv and its zero 'same' padding into the MXU contraction dim."""
    c_, C1 = w1_oihw.shape[0], w1_oihw.shape[1]
    w1t = jnp.transpose(w1_oihw[:, :, 0, :], (2, 1, 0))           # (k, C1, c_)
    wi = jnp.arange(W)[:, None, None]
    wo = jnp.arange(W)[None, :, None]
    tt = jnp.arange(k)[None, None, :]
    sel = (wi == wo + tt - pad).astype(w1t.dtype)                 # (W, W, k)
    big = jnp.einsum("iwt,tcd->icwd", sel, w1t)                   # (W, C1, W, c_)
    return big.reshape(W * C1, W * c_).astype(dtype)


def _pack_w2_blockdiag(w2_oihw, W, k, g, dtype):
    """cv2 weight (C2, c_/g, k, 1) -> (k, W*c_, W*C2): groups densified into a
    block-diagonal (c_, C2) per tap, then block-diagonal over W."""
    C2, c_pg = w2_oihw.shape[0], w2_oihw.shape[1]
    c2_pg = C2 // g
    c_ = c_pg * g
    w2t = jnp.transpose(w2_oihw[:, :, :, 0], (2, 1, 0))           # (k, c_pg, C2)
    dense = jnp.zeros((k, c_, C2), w2t.dtype)
    for gi in range(g):                                           # host loop, tiny
        dense = dense.at[:, gi * c_pg:(gi + 1) * c_pg,
                         gi * c2_pg:(gi + 1) * c2_pg].set(
            w2t[:, :, gi * c2_pg:(gi + 1) * c2_pg])
    eye = jnp.eye(W, dtype=dense.dtype)
    big = jnp.einsum("wv,tcd->twcvd", eye, dense)                 # (k, W, c_, W, C2)
    return big.reshape(k, W * c_, W * C2).astype(dtype)


# ----------------------------------------------------------------------------
# Wrappers
# ----------------------------------------------------------------------------
def _forward_packed(x_nchw, p1, p2, *, k, g, add, compute_dtype, tile_batch):
    N, C1, H, W = x_nchw.shape
    c_ = p1["weight"].shape[0]
    C2 = p2["weight"].shape[0]
    pad = k // 2
    WC1, WC_, WC2 = W * C1, W * c_, W * C2

    scale1, bias1 = fold_bn(p1)
    scale2, bias2 = fold_bn(p2)
    w1big = _pack_w1_banded(p1["weight"], W, k, pad, compute_dtype)
    w2big = _pack_w2_blockdiag(p2["weight"], W, k, g, compute_dtype)
    s1 = jnp.tile(scale1, W).reshape(1, WC_)
    b1 = jnp.tile(bias1, W).reshape(1, WC_)
    s2 = jnp.tile(scale2, W).reshape(1, WC2)
    b2 = jnp.tile(bias2, W).reshape(1, WC2)

    # NCHW -> NHWC -> lane-packed (N, H, W*C1); the final reshape is free in HBM.
    x_p = jnp.transpose(x_nchw, (0, 2, 3, 1)).reshape(N, H, WC1)

    vmem_limit = _vmem_limit_bytes()
    itemsize = jnp.dtype(compute_dtype).itemsize
    if tile_batch is None:
        tile_batch = _tile_batch_packed(N, H, WC1, WC_, WC2, k, itemsize,
                                        vmem_limit)
    tile_batch = max(1, min(int(tile_batch), N))
    n_pad = pl.cdiv(N, tile_batch) * tile_batch
    if n_pad != N:                                 # batch tail: pad, slice after
        x_p = jnp.pad(x_p, ((0, n_pad - N), (0, 0), (0, 0)))

    kernel = functools.partial(_cross_conv_kernel_packed, k=k, pad=pad, add=add,
                               cdt=compute_dtype)
    flops = int(2 * n_pad * H * (WC1 * WC_ + k * WC_ * WC2))
    transcendentals = int(n_pad * H * (WC_ + WC2))
    bytes_accessed = int(4 * n_pad * H * (WC1 + WC2)
                         + itemsize * (w1big.size + w2big.size)
                         + 4 * 2 * (WC_ + WC2))

    out = pl.pallas_call(
        kernel,
        out_shape=jax.ShapeDtypeStruct((n_pad, H, WC2), x_nchw.dtype),
        grid=(n_pad // tile_batch,),
        in_specs=[
            pl.BlockSpec((tile_batch, H, WC1), lambda i: (i, 0, 0)),
            pl.BlockSpec((WC1, WC_), lambda i: (0, 0)),
            pl.BlockSpec((1, WC_), lambda i: (0, 0)),
            pl.BlockSpec((1, WC_), lambda i: (0, 0)),
            pl.BlockSpec((k, WC_, WC2), lambda i: (0, 0, 0)),
            pl.BlockSpec((1, WC2), lambda i: (0, 0)),
            pl.BlockSpec((1, WC2), lambda i: (0, 0)),
        ],
        out_specs=pl.BlockSpec((tile_batch, H, WC2), lambda i: (i, 0, 0)),
        scratch_shapes=[pltpu.VMEM((tile_batch, H + 16, WC_), jnp.float32)],
        compiler_params=pltpu.CompilerParams(
            dimension_semantics=("parallel",),
            vmem_limit_bytes=vmem_limit),
        cost_estimate=pl.CostEstimate(flops=flops,
                                      transcendentals=transcendentals,
                                      bytes_accessed=bytes_accessed),
    )(x_p, w1big, s1, b1, w2big, s2, b2)

    if n_pad != N:
        out = out[:N]
    out = out.reshape(N, H, W, C2)
    return jnp.transpose(out, (0, 3, 1, 2))        # back to NCHW


def _forward_general(x_nchw, p1, p2, *, k, g, add, compute_dtype, tile_batch):
    N, C1, H, W = x_nchw.shape
    c_ = p1["weight"].shape[0]
    C2 = p2["weight"].shape[0]
    pad = k // 2
    pada = 8 * ((pad + 7) // 8)          # sublane-aligned pad in the W scratch
    c_pg, c2_pg = c_ // g, C2 // g

    scale1, bias1 = fold_bn(p1)
    scale2, bias2 = fold_bn(p2)
    # cv1 weight (c_, C1, 1, k) -> (k, C1, c_)
    w1 = jnp.transpose(p1["weight"][:, :, 0, :], (2, 1, 0)).astype(compute_dtype)
    # cv2 weight (C2, c_/g, k, 1) -> (g, k, c_/g, C2/g)   (kept grouped)
    w2 = p2["weight"][:, :, :, 0].reshape(g, c2_pg, c_pg, k)
    w2 = jnp.transpose(w2, (0, 3, 2, 1)).astype(compute_dtype)

    x_nhwc = jnp.transpose(x_nchw, (0, 2, 3, 1))

    vmem_limit = _vmem_limit_bytes()
    itemsize = jnp.dtype(compute_dtype).itemsize
    if tile_batch is None:
        tile_batch = _tile_batch_general(N, H, W, C1, c_, C2, k, g, pad, pada,
                                         itemsize, vmem_limit)
    tile_batch = max(1, min(int(tile_batch), N))
    n_pad = pl.cdiv(N, tile_batch) * tile_batch
    if n_pad != N:
        x_nhwc = jnp.pad(x_nhwc, ((0, n_pad - N), (0, 0), (0, 0), (0, 0)))

    kernel = functools.partial(_cross_conv_kernel_general, k=k, pad=pad,
                               pada=pada, g=g, add=add, cdt=compute_dtype)
    flops = int(2 * n_pad * H * W * k * (C1 * c_ + c_pg * C2))
    transcendentals = int(n_pad * H * W * (c_ + C2))
    bytes_accessed = int(4 * n_pad * H * W * (C1 + C2)
                         + itemsize * (w1.size + w2.size) + 4 * 2 * (c_ + C2))

    out = pl.pallas_call(
        kernel,
        out_shape=jax.ShapeDtypeStruct((n_pad, H, W, C2), x_nchw.dtype),
        grid=(n_pad // tile_batch,),
        in_specs=[
            pl.BlockSpec((tile_batch, H, W, C1), lambda i: (i, 0, 0, 0)),
            pl.BlockSpec((k, C1, c_), lambda i: (0, 0, 0)),
            pl.BlockSpec((1, c_), lambda i: (0, 0)),
            pl.BlockSpec((1, c_), lambda i: (0, 0)),
            pl.BlockSpec((g, k, c_pg, c2_pg), lambda i: (0, 0, 0, 0)),
            pl.BlockSpec((1, C2), lambda i: (0, 0)),
            pl.BlockSpec((1, C2), lambda i: (0, 0)),
        ],
        out_specs=pl.BlockSpec((tile_batch, H, W, C2), lambda i: (i, 0, 0, 0)),
        scratch_shapes=[
            pltpu.VMEM((tile_batch, H, W + 2 * pada, C1), jnp.float32),
            pltpu.VMEM((tile_batch, H + 2 * pad, W, c_), jnp.float32),
        ],
        compiler_params=pltpu.CompilerParams(
            dimension_semantics=("parallel",),
            vmem_limit_bytes=vmem_limit),
        cost_estimate=pl.CostEstimate(flops=flops,
                                      transcendentals=transcendentals,
                                      bytes_accessed=bytes_accessed),
    )(x_nhwc, w1, scale1.reshape(1, c_), bias1.reshape(1, c_),
      w2, scale2.reshape(1, C2), bias2.reshape(1, C2))

    if n_pad != N:
        out = out[:N]
    return jnp.transpose(out, (0, 3, 1, 2))


def cross_conv_forward(x_nchw, p1, p2, *, k=3, s=1, g=1, shortcut=False,
                       compute_dtype=jnp.bfloat16, tile_batch=None,
                       force_general=False):
    """Fused CrossConv forward.  x_nchw: (N, C1, H, W) f32 -> (N, C2, H, W) f32."""
    if s != 1:
        # TODO(synk): strided (s>1) path not implemented (module default s=1).
        raise NotImplementedError("only s=1 supported")
    if k % 2 != 1:
        raise NotImplementedError("only odd k ('same' padding) supported")
    N, C1, H, W = x_nchw.shape
    c_ = p1["weight"].shape[0]
    C2 = p2["weight"].shape[0]
    assert c_ % g == 0 and C2 % g == 0
    pad = k // 2
    add = bool(shortcut and C1 == C2)

    use_packed = (not force_general
                  and H % 8 == 0 and pad <= 8
                  and max(W * C1, W * c_, W * C2) <= _PACKED_LANE_MAX)
    if use_packed:
        return _forward_packed(x_nchw, p1, p2, k=k, g=g, add=add,
                               compute_dtype=compute_dtype,
                               tile_batch=tile_batch)
    if H % 8 or W % 8:
        # TODO(synk): non-multiple-of-8 H/W on the general path needs masked tails.
        raise NotImplementedError("H and W must be multiples of 8")
    return _forward_general(x_nchw, p1, p2, k=k, g=g, add=add,
                            compute_dtype=compute_dtype, tile_batch=tile_batch)


# ----------------------------------------------------------------------------
# Pure-JAX reference (lax conv) for correctness check
# ----------------------------------------------------------------------------
def _ref_conv_bn_silu(x, p, stride, padding, g):
    y = lax.conv_general_dilated(
        x, p["weight"], window_strides=stride, padding=padding,
        dimension_numbers=("NCHW", "OIHW", "NCHW"), feature_group_count=g)
    scale, bias = fold_bn(p)
    y = y * scale[None, :, None, None] + bias[None, :, None, None]
    return y * jax.nn.sigmoid(y)


def cross_conv_reference(x, p1, p2, *, k, s, g, shortcut):
    pad = k // 2
    y = _ref_conv_bn_silu(x, p1, (1, s), [(0, 0), (pad, pad)], 1)
    y = _ref_conv_bn_silu(y, p2, (s, 1), [(pad, pad), (0, 0)], g)
    if shortcut and x.shape[1] == y.shape[1]:
        y = x + y
    return y


# ----------------------------------------------------------------------------
if __name__ == "__main__":
    # Module hyper-params (defaults): k=3, s=1, g=1, e=1.0
    c1, c2, k, s, g, e = 4, 4, 3, 1, 1, 1.0
    c_ = int(c2 * e)
    N, H, W = 2, 16, 16

    key = jax.random.PRNGKey(0)
    kx, k1, k2 = jax.random.split(key, 3)
    x = jax.random.normal(kx, (N, c1, H, W), jnp.float32)
    p1 = make_conv_bn_params(k1, c1, c_, 1, k, 1)   # cv1: (1,k) conv
    p2 = make_conv_bn_params(k2, c_, c2, k, 1, g)   # cv2: (k,1) conv, groups=g

    ref_ns = cross_conv_reference(x, p1, p2, k=k, s=s, g=g, shortcut=False)
    ref_sc = cross_conv_reference(x, p1, p2, k=k, s=s, g=g, shortcut=True)

    # 1) Lane-packed path, f32 operands, shortcut=False (module defaults).
    out = jax.block_until_ready(cross_conv_forward(
        x, p1, p2, k=k, s=s, g=g, shortcut=False, compute_dtype=jnp.float32))
    assert out.shape == ref_ns.shape == (N, c2, H, W)
    if not jnp.allclose(out, ref_ns, atol=1e-4, rtol=1e-4):
        raise AssertionError("Pallas CrossConv (packed, f32) mismatch vs reference")

    # 2) Lane-packed path, bf16 MXU operands (f32 accumulate) + fused residual.
    out_bf = jax.block_until_ready(cross_conv_forward(
        x, p1, p2, k=k, s=s, g=g, shortcut=True))      # compute_dtype=bf16 default
    assert out_bf.shape == ref_sc.shape == (N, c2, H, W)
    if not jnp.allclose(out_bf, ref_sc, atol=1e-1, rtol=1e-1):
        raise AssertionError("Pallas CrossConv (packed, bf16) mismatch vs reference")

    # 3) General (large-channel fallback) path forced at the same shapes.
    out_gen = jax.block_until_ready(cross_conv_forward(
        x, p1, p2, k=k, s=s, g=g, shortcut=True, compute_dtype=jnp.float32,
        force_general=True))
    if not jnp.allclose(out_gen, ref_sc, atol=1e-4, rtol=1e-4):
        raise AssertionError("Pallas CrossConv (general, f32) mismatch vs reference")

    print("KERNEL_OK")
</pallas_src>

<mosaic_0001>
module attributes {stable_mosaic.version = 11 : i64} {
  func.func @_cross_conv_kernel_packed(%arg0: i32, %arg1: memref<1x16x64xf32, #tpu.memory_space<vmem>>, %arg2: memref<64x64xf32, #tpu.memory_space<vmem>>, %arg3: memref<1x64xf32, #tpu.memory_space<vmem>>, %arg4: memref<1x64xf32, #tpu.memory_space<vmem>>, %arg5: memref<3x64x64xf32, #tpu.memory_space<vmem>>, %arg6: memref<1x64xf32, #tpu.memory_space<vmem>>, %arg7: memref<1x64xf32, #tpu.memory_space<vmem>>, %arg8: memref<1x16x64xf32, #tpu.memory_space<vmem>>, %arg9: memref<1x32x64xf32, #tpu.memory_space<vmem>>) attributes {dimension_semantics = [#tpu.dimension_semantics<parallel>], iteration_bounds = array<i64: 2>, scalar_prefetch = 0 : i64, scratch_operands = 1 : i64, tpu.core_type = #tpu.core_type<tc>, window_params = [{transform_indices = @transform_0, window_bounds = array<i64: 1, 16, 64>}, {pipeline_mode = #tpu.pipeline_mode<synchronous>, transform_indices = @transform_1, window_bounds = array<i64: 64, 64>}, {pipeline_mode = #tpu.pipeline_mode<synchronous>, transform_indices = @transform_2, window_bounds = array<i64: 1, 64>}, {pipeline_mode = #tpu.pipeline_mode<synchronous>, transform_indices = @transform_3, window_bounds = array<i64: 1, 64>}, {pipeline_mode = #tpu.pipeline_mode<synchronous>, transform_indices = @transform_4, window_bounds = array<i64: 3, 64, 64>}, {pipeline_mode = #tpu.pipeline_mode<synchronous>, transform_indices = @transform_5, window_bounds = array<i64: 1, 64>}, {pipeline_mode = #tpu.pipeline_mode<synchronous>, transform_indices = @transform_6, window_bounds = array<i64: 1, 64>}, {transform_indices = @transform_7, window_bounds = array<i64: 1, 16, 64>}]} {
    %c0 = arith.constant 0 : index
    %c0_0 = arith.constant 0 : index
    %c0_1 = arith.constant 0 : index
    %0 = vector.load %arg1[%c0, %c0_0, %c0_1] : memref<1x16x64xf32, #tpu.memory_space<vmem>>, vector<1x16x64xf32>
    %1 = vector.shape_cast %0 : vector<1x16x64xf32> to vector<16x64xf32>
    %c0_2 = arith.constant 0 : index
    %c0_3 = arith.constant 0 : index
    %2 = vector.load %arg2[%c0_2, %c0_3] : memref<64x64xf32, #tpu.memory_space<vmem>>, vector<64x64xf32>
    %cst = arith.constant dense<0.000000e+00> : vector<16x64xf32>
    %3 = tpu.matmul %1, %2, %cst {dimension_numbers = #tpu.dot_dimension_numbers<[1], [0], [0], [1], [0, 0, 1, 1], [], []>} : vector<16x64xf32>, vector<64x64xf32>, vector<16x64xf32> -> vector<16x64xf32>
    %c0_4 = arith.constant 0 : index
    %c0_5 = arith.constant 0 : index
    %4 = vector.load %arg3[%c0_4, %c0_5] : memref<1x64xf32, #tpu.memory_space<vmem>>, vector<1x64xf32>
    %5 = vector.broadcast %4 : vector<1x64xf32> to vector<16x64xf32>
    %6 = arith.mulf %3, %5 : vector<16x64xf32>
    %c0_6 = arith.constant 0 : index
    %c0_7 = arith.constant 0 : index
    %7 = vector.load %arg4[%c0_6, %c0_7] : memref<1x64xf32, #tpu.memory_space<vmem>>, vector<1x64xf32>
    %8 = vector.broadcast %7 : vector<1x64xf32> to vector<16x64xf32>
    %9 = arith.addf %6, %8 : vector<16x64xf32>
    %10 = arith.negf %9 : vector<16x64xf32>
    %11 = math.exp %10 : vector<16x64xf32>
    %cst_8 = arith.constant 1.000000e+00 : f32
    %12 = vector.broadcast %cst_8 : f32 to vector<16x64xf32>
    %13 = arith.addf %12, %11 : vector<16x64xf32>
    %14 = arith.divf %12, %13 : vector<16x64xf32>
    %15 = arith.mulf %9, %14 : vector<16x64xf32>
    %cst_9 = arith.constant 0.000000e+00 : f32
    %16 = vector.broadcast %cst_9 : f32 to vector<1x8x64xf32>
    %c0_10 = arith.constant 0 : index
    %c0_11 = arith.constant 0 : index
    %c0_12 = arith.constant 0 : index
    %17 = vector.load %arg9[%c0_10, %c0_11, %c0_12] : memref<1x32x64xf32, #tpu.memory_space<vmem>>, vector<1x8x64xf32>
    tpu.vector_store %arg9[%c0_10, %c0_11, %c0_12], %16 {strides = array<i32>} : memref<1x32x64xf32, #tpu.memory_space<vmem>>, vector<1x8x64xf32>,
    %cst_13 = arith.constant 0.000000e+00 : f32
    %18 = vector.broadcast %cst_13 : f32 to vector<1x8x64xf32>
    %c0_14 = arith.constant 0 : index
    %c24 = arith.constant 24 : index
    %c0_15 = arith.constant 0 : index
    %19 = vector.load %arg9[%c0_14, %c24, %c0_15] : memref<1x32x64xf32, #tpu.memory_space<vmem>>, vector<1x8x64xf32>
    tpu.vector_store %arg9[%c0_14, %c24, %c0_15], %18 {strides = array<i32>} : memref<1x32x64xf32, #tpu.memory_space<vmem>>, vector<1x8x64xf32>,
    %20 = vector.shape_cast %15 : vector<16x64xf32> to vector<1x16x64xf32>
    %c0_16 = arith.constant 0 : index
    %c8 = arith.constant 8 : index
    %c0_17 = arith.constant 0 : index
    %21 = vector.load %arg9[%c0_16, %c8, %c0_17] : memref<1x32x64xf32, #tpu.memory_space<vmem>>, vector<1x16x64xf32>
    tpu.vector_store %arg9[%c0_16, %c8, %c0_17], %20 {strides = array<i32>} : memref<1x32x64xf32, #tpu.memory_space<vmem>>, vector<1x16x64xf32>,
    %cst_18 = arith.constant 0.000000e+00 : f32
    %22 = vector.broadcast %cst_18 : f32 to vector<16x64xf32>
    %c0_19 = arith.constant 0 : index
    %c7 = arith.constant 7 : index
    %c0_20 = arith.constant 0 : index
    %23 = vector.load %arg9[%c0_19, %c7, %c0_20] : memref<1x32x64xf32, #tpu.memory_space<vmem>>, vector<1x16x64xf32>
    %24 = vector.shape_cast %23 : vector<1x16x64xf32> to vector<16x64xf32>
    %c0_21 = arith.constant 0 : index
    %c0_22 = arith.constant 0 : index
    %c0_23 = arith.constant 0 : index
    %25 = vector.load %arg5[%c0_21, %c0_22, %c0_23] : memref<3x64x64xf32, #tpu.memory_space<vmem>>, vector<1x64x64xf32>
    %26 = vector.shape_cast %25 : vector<1x64x64xf32> to vector<64x64xf32>
    %cst_24 = arith.constant dense<0.000000e+00> : vector<16x64xf32>
    %27 = tpu.matmul %24, %26, %cst_24 {dimension_numbers = #tpu.dot_dimension_numbers<[1], [0], [0], [1], [0, 0, 1, 1], [], []>} : vector<16x64xf32>, vector<64x64xf32>, vector<16x64xf32> -> vector<16x64xf32>
    %28 = arith.addf %22, %27 : vector<16x64xf32>
    %c0_25 = arith.constant 0 : index
    %c8_26 = arith.constant 8 : index
    %c0_27 = arith.constant 0 : index
    %29 = vector.load %arg9[%c0_25, %c8_26, %c0_27] : memref<1x32x64xf32, #tpu.memory_space<vmem>>, vector<1x16x64xf32>
    %30 = vector.shape_cast %29 : vector<1x16x64xf32> to vector<16x64xf32>
    %c1 = arith.constant 1 : index
    %c0_28 = arith.constant 0 : index
    %c0_29 = arith.constant 0 : index
    %31 = vector.load %arg5[%c1, %c0_28, %c0_29] : memref<3x64x64xf32, #tpu.memory_space<vmem>>, vector<1x64x64xf32>
    %32 = vector.shape_cast %31 : vector<1x64x64xf32> to vector<64x64xf32>
    %cst_30 = arith.constant dense<0.000000e+00> : vector<16x64xf32>
    %33 = tpu.matmul %30, %32, %cst_30 {dimension_numbers = #tpu.dot_dimension_numbers<[1], [0], [0], [1], [0, 0, 1, 1], [], []>} : vector<16x64xf32>, vector<64x64xf32>, vector<16x64xf32> -> vector<16x64xf32>
    %34 = arith.addf %28, %33 : vector<16x64xf32>
    %c0_31 = arith.constant 0 : index
    %c9 = arith.constant 9 : index
    %c0_32 = arith.constant 0 : index
    %35 = vector.load %arg9[%c0_31, %c9, %c0_32] : memref<1x32x64xf32, #tpu.memory_space<vmem>>, vector<1x16x64xf32>
    %36 = vector.shape_cast %35 : vector<1x16x64xf32> to vector<16x64xf32>
    %c2 = arith.constant 2 : index
    %c0_33 = arith.constant 0 : index
    %c0_34 = arith.constant 0 : index
    %37 = vector.load %arg5[%c2, %c0_33, %c0_34] : memref<3x64x64xf32, #tpu.memory_space<vmem>>, vector<1x64x64xf32>
    %38 = vector.shape_cast %37 : vector<1x64x64xf32> to vector<64x64xf32>
    %cst_35 = arith.constant dense<0.000000e+00> : vector<16x64xf32>
    %39 = tpu.matmul %36, %38, %cst_35 {dimension_numbers = #tpu.dot_dimension_numbers<[1], [0], [0], [1], [0, 0, 1, 1], [], []>} : vector<16x64xf32>, vector<64x64xf32>, vector<16x64xf32> -> vector<16x64xf32>
    %40 = arith.addf %34, %39 : vector<16x64xf32>
    %c0_36 = arith.constant 0 : index
    %c0_37 = arith.constant 0 : index
    %41 = vector.load %arg6[%c0_36, %c0_37] : memref<1x64xf32, #tpu.memory_space<vmem>>, vector<1x64xf32>
    %42 = vector.broadcast %41 : vector<1x64xf32> to vector<16x64xf32>
    %43 = arith.mulf %40, %42 : vector<16x64xf32>
    %c0_38 = arith.constant 0 : index
    %c0_39 = arith.constant 0 : index
    %44 = vector.load %arg7[%c0_38, %c0_39] : memref<1x64xf32, #tpu.memory_space<vmem>>, vector<1x64xf32>
    %45 = vector.broadcast %44 : vector<1x64xf32> to vector<16x64xf32>
    %46 = arith.addf %43, %45 : vector<16x64xf32>
    %47 = arith.negf %46 : vector<16x64xf32>
    %48 = math.exp %47 : vector<16x64xf32>
    %cst_40 = arith.constant 1.000000e+00 : f32
    %49 = vector.broadcast %cst_40 : f32 to vector<16x64xf32>
    %50 = arith.addf %49, %48 : vector<16x64xf32>
    %51 = arith.divf %49, %50 : vector<16x64xf32>
    %52 = arith.mulf %46, %51 : vector<16x64xf32>
    %53 = vector.shape_cast %52 : vector<16x64xf32> to vector<1x16x64xf32>
    %c0_41 = arith.constant 0 : index
    %c0_42 = arith.constant 0 : index
    %c0_43 = arith.constant 0 : index
    %54 = vector.load %arg8[%c0_41, %c0_42, %c0_43] : memref<1x16x64xf32, #tpu.memory_space<vmem>>, vector<1x16x64xf32>
    tpu.vector_store %arg8[%c0_41, %c0_42, %c0_43], %53 {strides = array<i32>} : memref<1x16x64xf32, #tpu.memory_space<vmem>>, vector<1x16x64xf32>,
    return
  }
  func.func @transform_0(%arg0: i32) -> (i32, i32, i32) {
    %c0_i32 = arith.constant 0 : i32
    %c0_i32_0 = arith.constant 0 : i32
    %c0_i32_1 = arith.constant 0 : i32
    return %arg0, %c0_i32, %c0_i32_0 : i32, i32, i32
  }
  func.func @transform_1(%arg0: i32) -> (i32, i32) {
    %c0_i32 = arith.constant 0 : i32
    %c0_i32_0 = arith.constant 0 : i32
    %c0_i32_1 = arith.constant 0 : i32
    return %c0_i32, %c0_i32_0 : i32, i32
  }
  func.func @transform_2(%arg0: i32) -> (i32, i32) {
    %c0_i32 = arith.constant 0 : i32
    %c0_i32_0 = arith.constant 0 : i32
    %c0_i32_1 = arith.constant 0 : i32
    return %c0_i32, %c0_i32_0 : i32, i32
  }
  func.func @transform_3(%arg0: i32) -> (i32, i32) {
    %c0_i32 = arith.constant 0 : i32
    %c0_i32_0 = arith.constant 0 : i32
    %c0_i32_1 = arith.constant 0 : i32
    return %c0_i32, %c0_i32_0 : i32, i32
  }
  func.func @transform_4(%arg0: i32) -> (i32, i32, i32) {
    %c0_i32 = arith.constant 0 : i32
    %c0_i32_0 = arith.constant 0 : i32
    %c0_i32_1 = arith.constant 0 : i32
    %c0_i32_2 = arith.constant 0 : i32
    return %c0_i32, %c0_i32_0, %c0_i32_1 : i32, i32, i32
  }
  func.func @transform_5(%arg0: i32) -> (i32, i32) {
    %c0_i32 = arith.constant 0 : i32
    %c0_i32_0 = arith.constant 0 : i32
    %c0_i32_1 = arith.constant 0 : i32
    return %c0_i32, %c0_i32_0 : i32, i32
  }
  func.func @transform_6(%arg0: i32) -> (i32, i32) {
    %c0_i32 = arith.constant 0 : i32
    %c0_i32_0 = arith.constant 0 : i32
    %c0_i32_1 = arith.constant 0 : i32
    return %c0_i32, %c0_i32_0 : i32, i32
  }
  func.func @transform_7(%arg0: i32) -> (i32, i32, i32) {
    %c0_i32 = arith.constant 0 : i32
    %c0_i32_0 = arith.constant 0 : i32
    %c0_i32_1 = arith.constant 0 : i32
    return %arg0, %c0_i32, %c0_i32_0 : i32, i32, i32
  }
}

</mosaic_0001>

<llo_original>
// kernel: tpu_custom_call.1
$region0: #{tpu_custom_call.1}
  #allocation0 [shape = 'u32[]', space=smem, size = 0x4, offset = 0x4, fixed_abs, tag = 'smem constant byte address 0x4 - core index']
  #allocation1 [shape = 'u32[144,128]{1,0:T(1,128)}', space=vmem, size = 0x12000, scoped, tag = 'internal scratch']
  #allocation2 [shape = 'f32[1,32,64]{2,1,0:T(8,128)}', space=vmem, size = 0x4000, scoped, tag = 'scratch operand']
  %s0 = inlined_call_operand.hbm [shape: f32[2,16,64], index: 0, kind: input, shape index: {}]
  %s1 = inlined_call_operand.hbm [shape: f32[64,64], index: 1, kind: input, shape index: {}]
  %s2 = inlined_call_operand.vmem [shape: f32[1,64], index: 2, kind: input, shape index: {}]
  %s3 = inlined_call_operand.vmem [shape: f32[1,64], index: 3, kind: input, shape index: {}]
  %s4 = inlined_call_operand.hbm [shape: f32[3,64,64], index: 4, kind: input, shape index: {}]
  %s5 = inlined_call_operand.vmem [shape: f32[1,64], index: 5, kind: input, shape index: {}]
  %s6 = inlined_call_operand.vmem [shape: f32[1,64], index: 6, kind: input, shape index: {}]
  %s7 = inlined_call_operand.hbm [shape: f32[2,16,64], index: 7, kind: output, shape index: {}]
  %s8 = sld [smem:[#allocation0]]
  $region73: #{tpu_custom_call.1} parent=0
    _
  %s10 = ssub.s32 1, %s8
  %s11 = scalar_select 0, %s10, %s8
  $region1: #{tpu_custom_call.1} parent=0
    #allocation3 [shape = 'u8[16384]{0}', space=vmem, size = 0x4000, scoped, tag = 'input window, operand 0']
    #allocation4 [shape = 's32[2]{0}', space=sflag, size = 0x8, scoped, tag = 'scoped memory for tpu_custom_call.1']
    #allocation5 [shape = 's32[2]{0}', space=sflag, size = 0x8, scoped, tag = 'scoped memory for tpu_custom_call.1']
    #allocation6 [shape = 'u8[32768]{0}', space=vmem, size = 0x8000, scoped, tag = 'input window, operand 1, single buffered']
    #allocation7 [shape = 's32[1]{0}', space=sflag, size = 0x4, scoped, tag = 'scoped memory for tpu_custom_call.1']
    #allocation8 [shape = 'u8[98304]{0}', space=vmem, size = 0x18000, scoped, tag = 'input window, operand 4, single buffered']
    #allocation9 [shape = 'u8[16384]{0}', space=vmem, size = 0x4000, scoped, tag = 'output window, operand 0']
    %12 = vsyncpa [#allocation4], 0
    %s13 = scalar_lea.sflag [#allocation4], 1
    %14 = vsyncpa %s13, 0
    %15 = vsyncpa [#allocation7], 0
    %16 = vsyncpa [#allocation5], 0
    %s17 = scalar_lea.sflag [#allocation5], 1
    %18 = vsyncpa %s17, 0
    loop: start=0, step=1, limit=4
    $region2: #{tpu_custom_call.1} parent=1 // loop_pre_header
      _
    $region3: #{tpu_custom_call.1} parent=1 // loop_header
      %s20 = sphi 0, %s24
      %p21 = scmp.ge.s32.totalorder %s20, 4
      %s30 = sphi 0, %s32
      %s33 = sphi 0, %s30
      %s34 = sphi 0, %s33
      %s50 = sphi 0, %s34
      %s54 = sphi 0, %s54
      %s56 = sphi 0, %s54
      %s57 = sphi 0, %s56
      %s71 = sphi 0, %s57
      %s75 = sphi 0, %s75
      %s77 = sphi 0, %s75
      %s78 = sphi 0, %s77
      %s92 = sphi 0, %s78
      %s96 = sphi 0, %s96
      %s98 = sphi 0, %s96
      %s99 = sphi 0, %s98
      %s113 = sphi 0, %s99
      %s117 = sphi 0, %s117
      %s119 = sphi 0, %s117
      %s120 = sphi 0, %s119
      %s134 = sphi 0, %s120
      %s138 = sphi 0, %s138
      %s140 = sphi 0, %s138
      %s141 = sphi 0, %s140
      %s155 = sphi 0, %s141
      %s159 = sphi 0, %s159
      %s161 = sphi 0, %s159
      %s162 = sphi 0, %s161
      %s176 = sphi 0, %s162
      %s182 = sphi 0, %s184
      %s185 = sphi 0, %s182
      %s186 = sphi 0, %s185
      %s202 = sphi 0, %s186
    $region4: #{tpu_custom_call.1} parent=1 // loop_header_branch
      %23 = sbr.rel (%p21) target = $region8
    $region5: #{tpu_custom_call.1} parent=1 // loop_body
      %s25 = ssub.s32 %s20, 1
      %s26 = ssub.s32 %s20, 2
      %s27 = sadd.s32 %s20, 1
      %s28 = ssub.s32 %s20, %s27
      %p29 = scmp.eq.s32.totalorder %s28, 0
      %s31 = sadd.s32 %s30, 1
      %s32 = scalar_select %p29, %s30, %s31
      %p35 = pneg %p29
      %p36 = scmp.eq.s32.totalorder %s20, 1
      %p37 = por %p35, %p36
      %p38 = scmp.ne.s32.totalorder %s30, %s33
      %p39 = scmp.eq.s32.totalorder %s20, 0
      %p40 = por %p38, %p39
      %p41 = scmp.ne.s32.totalorder %s30, %s33
      %p42 = scmp.eq.s32.totalorder %s25, 1
      %p43 = por %p41, %p42
      %p44 = scmp.ne.s32.totalorder %s33, %s34
      %p45 = scmp.eq.s32.totalorder %s25, 0
      %p46 = por %p44, %p45
      %p47 = scmp.ne.s32.totalorder %s33, %s34
      %p48 = scmp.eq.s32.totalorder %s26, 1
      %p49 = por %p47, %p48
      %p51 = scmp.ne.s32.totalorder %s34, %s50
      %p52 = scmp.eq.s32.totalorder %s26, 0
      %p53 = por %p51, %p52
      %s55 = sadd.s32 %s54, 1
      %p58 = scmp.eq.s32.totalorder %s20, 1
      %p59 = scmp.ne.s32.totalorder %s54, %s56
      %p60 = scmp.eq.s32.totalorder %s20, 0
      %p61 = por %p59, %p60
      %p62 = scmp.ne.s32.totalorder %s54, %s56
      %p63 = scmp.eq.s32.totalorder %s25, 1
      %p64 = por %p62, %p63
      %p65 = scmp.ne.s32.totalorder %s56, %s57
      %p66 = scmp.eq.s32.totalorder %s25, 0
      %p67 = por %p65, %p66
      %p68 = scmp.ne.s32.totalorder %s56, %s57
      %p69 = scmp.eq.s32.totalorder %s26, 1
      %p70 = por %p68, %p69
      %p72 = scmp.ne.s32.totalorder %s57, %s71
      %p73 = scmp.eq.s32.totalorder %s26, 0
      %p74 = por %p72, %p73
      %s76 = sadd.s32 %s75, 1
      %p79 = scmp.eq.s32.totalorder %s20, 1
      %p80 = scmp.ne.s32.totalorder %s75, %s77
      %p81 = scmp.eq.s32.totalorder %s20, 0
      %p82 = por %p80, %p81
      %p83 = scmp.ne.s32.totalorder %s75, %s77
      %p84 = scmp.eq.s32.totalorder %s25, 1
      %p85 = por %p83, %p84
      %p86 = scmp.ne.s32.totalorder %s77, %s78
      %p87 = scmp.eq.s32.totalorder %s25, 0
      %p88 = por %p86, %p87
      %p89 = scmp.ne.s32.totalorder %s77, %s78
      %p90 = scmp.eq.s32.totalorder %s26, 1
      %p91 = por %p89, %p90
      %p93 = scmp.ne.s32.totalorder %s78, %s92
      %p94 = scmp.eq.s32.totalorder %s26, 0
      %p95 = por %p93, %p94
      %s97 = sadd.s32 %s96, 1
      %p100 = scmp.eq.s32.totalorder %s20, 1
      %p101 = scmp.ne.s32.totalorder %s96, %s98
      %p102 = scmp.eq.s32.totalorder %s20, 0
      %p103 = por %p101, %p102
      %p104 = scmp.ne.s32.totalorder %s96, %s98
      %p105 = scmp.eq.s32.totalorder %s25, 1
      %p106 = por %p104, %p105
      %p107 = scmp.ne.s32.totalorder %s98, %s99
      %p108 = scmp.eq.s32.totalorder %s25, 0
      %p109 = por %p107, %p108
      %p110 = scmp.ne.s32.totalorder %s98, %s99
      %p111 = scmp.eq.s32.totalorder %s26, 1
      %p112 = por %p110, %p111
      %p114 = scmp.ne.s32.totalorder %s99, %s113
      %p115 = scmp.eq.s32.totalorder %s26, 0
      %p116 = por %p114, %p115
      %s118 = sadd.s32 %s117, 1
      %p121 = scmp.eq.s32.totalorder %s20, 1
      %p122 = scmp.ne.s32.totalorder %s117, %s119
      %p123 = scmp.eq.s32.totalorder %s20, 0
      %p124 = por %p122, %p123
      %p125 = scmp.ne.s32.totalorder %s117, %s119
      %p126 = scmp.eq.s32.totalorder %s25, 1
      %p127 = por %p125, %p126
      %p128 = scmp.ne.s32.totalorder %s119, %s120
      %p129 = scmp.eq.s32.totalorder %s25, 0
      %p130 = por %p128, %p129
      %p131 = scmp.ne.s32.totalorder %s119, %s120
      %p132 = scmp.eq.s32.totalorder %s26, 1
      %p133 = por %p131, %p132
      %p135 = scmp.ne.s32.totalorder %s120, %s134
      %p136 = scmp.eq.s32.totalorder %s26, 0
      %p137 = por %p135, %p136
      %s139 = sadd.s32 %s138, 1
      %p142 = scmp.eq.s32.totalorder %s20, 1
      %p143 = scmp.ne.s32.totalorder %s138, %s140
      %p144 = scmp.eq.s32.totalorder %s20, 0
      %p145 = por %p143, %p144
      %p146 = scmp.ne.s32.totalorder %s138, %s140
      %p147 = scmp.eq.s32.totalorder %s25, 1
      %p148 = por %p146, %p147
      %p149 = scmp.ne.s32.totalorder %s140, %s141
      %p150 = scmp.eq.s32.totalorder %s25, 0
      %p151 = por %p149, %p150
      %p152 = scmp.ne.s32.totalorder %s140, %s141
      %p153 = scmp.eq.s32.totalorder %s26, 1
      %p154 = por %p152, %p153
      %p156 = scmp.ne.s32.totalorder %s141, %s155
      %p157 = scmp.eq.s32.totalorder %s26, 0
      %p158 = por %p156, %p157
      %s160 = sadd.s32 %s159, 1
      %p163 = scmp.eq.s32.totalorder %s20, 1
      %p164 = scmp.ne.s32.totalorder %s159, %s161
      %p165 = scmp.eq.s32.totalorder %s20, 0
      %p166 = por %p164, %p165
      %p167 = scmp.ne.s32.totalorder %s159, %s161
      %p168 = scmp.eq.s32.totalorder %s25, 1
      %p169 = por %p167, %p168
      %p170 = scmp.ne.s32.totalorder %s161, %s162
      %p171 = scmp.eq.s32.totalorder %s25, 0
      %p172 = por %p170, %p171
      %p173 = scmp.ne.s32.totalorder %s161, %s162
      %p174 = scmp.eq.s32.totalorder %s26, 1
      %p175 = por %p173, %p174
      %p177 = scmp.ne.s32.totalorder %s162, %s176
      %p178 = scmp.eq.s32.totalorder %s26, 0
      %p179 = por %p177, %p178
      %s180 = ssub.s32 %s20, %s27
      %p181 = scmp.eq.s32.totalorder %s180, 0
      %s183 = sadd.s32 %s182, 1
      %s184 = scalar_select %p181, %s182, %s183
      %p187 = pneg %p181
      %p188 = scmp.eq.s32.totalorder %s20, 1
      %p189 = por %p187, %p188
      %p190 = scmp.ne.s32.totalorder %s182, %s185
      %p191 = scmp.eq.s32.totalorder %s20, 0
      %p192 = por %p190, %p191
      %p193 = scmp.ne.s32.totalorder %s182, %s185
      %p194 = scmp.eq.s32.totalorder %s25, 1
      %p195 = por %p193, %p194
      %p196 = scmp.ne.s32.totalorder %s185, %s186
      %p197 = scmp.eq.s32.totalorder %s25, 0
      %p198 = por %p196, %p197
      %p199 = scmp.ne.s32.totalorder %s185, %s186
      %p200 = scmp.eq.s32.totalorder %s26, 1
      %p201 = por %p199, %p200
      %p203 = scmp.ne.s32.totalorder %s186, %s202
      %p204 = scmp.eq.s32.totalorder %s26, 0
      %p205 = por %p203, %p204
      %p206 = scmp.le.s32.totalorder 1, %s20
      %p207 = scmp.lt.s32.totalorder %s20, 3
      %p208 = pnand %p206, %p207
      %p209 = pneg %p208
      // Predicated region
      $region9: #{tpu_custom_call.1} parent=5 // pred_check
        _
      $region10: #{tpu_custom_call.1} parent=5 // pred_check_branch
        %211 = sbr.rel (%p208) target = $region12
      $region11: #{tpu_custom_call.1} parent=5 // pred_region
        %s212 = ssub.s32 %s20, 1
        // Predicated region
        $region13: #{tpu_custom_call.1} parent=11 // pred_check
          %p213 = pneg %p67
        $region14: #{tpu_custom_call.1} parent=11 // pred_check_branch
          %215 = sbr.rel (%p213) target = $region16
        $region15: #{tpu_custom_call.1} parent=11 // pred_region
          %s217 = ssub.s32 1024, 1024
          %218 = vsyncadd [#allocation7], %s217
          %s219 = sshll.u32 [#allocation6], 4
          %s220 = int_to_ptr.vmem [resolvable:$true] %s219
          %225 = dma.hbm_to_vmem [thread:$0]  %s1, 1024, %s220, [#allocation7], 128, 128, 8
        $region16: #{tpu_custom_call.1} parent=11 // pred_fallthru
          _
        // Predicated region
        $region17: #{tpu_custom_call.1} parent=11 // pred_check
          %p226 = pneg %p88
        $region18: #{tpu_custom_call.1} parent=11 // pred_check_branch
          %228 = sbr.rel (%p226) target = $region20
        $region19: #{tpu_custom_call.1} parent=11 // pred_region
          _
        $region20: #{tpu_custom_call.1} parent=11 // pred_fallthru
          _
        // Predicated region
        $region21: #{tpu_custom_call.1} parent=11 // pred_check
          %p229 = pneg %p109
        $region22: #{tpu_custom_call.1} parent=11 // pred_check_branch
          %231 = sbr.rel (%p229) target = $region24
        $region23: #{tpu_custom_call.1} parent=11 // pred_region
          _
        $region24: #{tpu_custom_call.1} parent=11 // pred_fallthru
          _
        // Predicated region
        $region25: #{tpu_custom_call.1} parent=11 // pred_check
          %p232 = pneg %p130
        $region26: #{tpu_custom_call.1} parent=11 // pred_check_branch
          %234 = sbr.rel (%p232) target = $region28
        $region27: #{tpu_custom_call.1} parent=11 // pred_region
          %s236 = ssub.s32 3072, 3072
          %237 = vsyncadd [#allocation7], %s236
          %s238 = sshll.u32 [#allocation8], 4
          %s239 = int_to_ptr.vmem [resolvable:$true] %s238
          %244 = dma.hbm_to_vmem [thread:$0]  %s4, 3072, %s239, [#allocation7], 128, 128, 8
        $region28: #{tpu_custom_call.1} parent=11 // pred_fallthru
          _
        // Predicated region
        $region29: #{tpu_custom_call.1} parent=11 // pred_check
          %p245 = pneg %p151
        $region30: #{tpu_custom_call.1} parent=11 // pred_check_branch
          %247 = sbr.rel (%p245) target = $region32
        $region31: #{tpu_custom_call.1} parent=11 // pred_region
          _
        $region32: #{tpu_custom_call.1} parent=11 // pred_fallthru
          _
        // Predicated region
        $region33: #{tpu_custom_call.1} parent=11 // pred_check
          %p248 = pneg %p172
        $region34: #{tpu_custom_call.1} parent=11 // pred_check_branch
          %250 = sbr.rel (%p248) target = $region36
        $region35: #{tpu_custom_call.1} parent=11 // pred_region
          _
        $region36: #{tpu_custom_call.1} parent=11 // pred_fallthru
          _
      $region12: #{tpu_custom_call.1} parent=5 // pred_fallthru
        _
      %p251 = scmp.lt.s32.totalorder %s20, 2
      // Predicated region
      $region37: #{tpu_custom_call.1} parent=5 // pred_check
        %p252 = pneg %p251
      $region38: #{tpu_custom_call.1} parent=5 // pred_check_branch
        %254 = sbr.rel (%p252) target = $region40
      $region39: #{tpu_custom_call.1} parent=5 // pred_region
        // Predicated region
        $region41: #{tpu_custom_call.1} parent=39 // pred_check
          %p255 = pneg %p40
        $region42: #{tpu_custom_call.1} parent=39 // pred_check_branch
          %257 = sbr.rel (%p255) target = $region44
        $region43: #{tpu_custom_call.1} parent=39 // pred_region
          %s258 = sand.u32 %s30, 1
          %s259 = scalar_lea.sflag [#allocation4], %s258
          %s260 = sand.u32 %s30, 1
          %s261 = smul.addr %s260, 16
          %s262 = scalar_lea.vmem [#allocation3], %s261
          %s264 = ssub.s32 256, 256
          %265 = vsyncadd %s259, %s264
          %s266 = smul.addr %s20, 2
          %s267 = smul.addr %s266, 128
          %s268 = scalar_lea.hbm %s0, %s267
          %s269 = sshll.u32 %s262, 4
          %s270 = int_to_ptr.vmem [resolvable:$true] %s269
          %275 = dma.hbm_to_vmem [thread:$0]  %s268, 256, %s270, %s259, 128, 128, 8
        $region44: #{tpu_custom_call.1} parent=39 // pred_fallthru
          _
      $region40: #{tpu_custom_call.1} parent=5 // pred_fallthru
        _
      %p276 = scmp.le.s32.totalorder 1, %s20
      %p277 = scmp.lt.s32.totalorder %s20, 3
      %p278 = pnand %p276, %p277
      %p279 = pneg %p278
      // Predicated region
      $region45: #{tpu_custom_call.1} parent=5 // pred_check
        _
      $region46: #{tpu_custom_call.1} parent=5 // pred_check_branch
        %281 = sbr.rel (%p278) target = $region48
      $region47: #{tpu_custom_call.1} parent=5 // pred_region
        %s282 = ssub.s32 %s20, 1
        %s283 = sand.u32 %s33, 1
        %s284 = scalar_lea.sflag [#allocation4], %s283
        %s285 = sand.u32 %s33, 1
        %s286 = smul.addr %s285, 16
        %s287 = scalar_lea.vmem [#allocation3], %s286
        // Predicated region
        $region49: #{tpu_custom_call.1} parent=47 // pred_check
          %p288 = pneg %p46
        $region50: #{tpu_custom_call.1} parent=47 // pred_check_branch
          %290 = sbr.rel (%p288) target = $region52
        $region51: #{tpu_custom_call.1} parent=47 // pred_region
          %291 = dma.done %s284, 256
        $region52: #{tpu_custom_call.1} parent=47 // pred_fallthru
          _
        // Predicated region
        $region53: #{tpu_custom_call.1} parent=47 // pred_check
          %p292 = pneg %p67
        $region54: #{tpu_custom_call.1} parent=47 // pred_check_branch
          %294 = sbr.rel (%p292) target = $region56
        $region55: #{tpu_custom_call.1} parent=47 // pred_region
          %295 = dma.done [#allocation7], 1024
        $region56: #{tpu_custom_call.1} parent=47 // pred_fallthru
          _
        // Predicated region
        $region57: #{tpu_custom_call.1} parent=47 // pred_check
          %p296 = pneg %p130
        $region58: #{tpu_custom_call.1} parent=47 // pred_check_branch
          %298 = sbr.rel (%p296) target = $region60
        $region59: #{tpu_custom_call.1} parent=47 // pred_region
          %299 = dma.done [#allocation7], 3072
        $region60: #{tpu_custom_call.1} parent=47 // pred_fallthru
          _
        %s300 = sand.u32 %s33, 1
        %s301 = scalar_lea.sflag [#allocation4], %s300
        %s302 = sand.u32 %s33, 1
        %s303 = smul.addr %s302, 16
        %s304 = scalar_lea.vmem [#allocation3], %s303
        %p305 = pneg %p46
        %p306 = pneg %p43
        %p307 = pneg %p67
        %p308 = pneg %p64
        %p309 = pneg %p88
        %p310 = pneg %p85
        %p311 = pneg %p109
        %p312 = pneg %p106
        %p313 = pneg %p130
        %p314 = pneg %p127
        %p315 = pneg %p151
        %p316 = pneg %p148
        %p317 = pneg %p172
        %p318 = pneg %p169
        %p319 = pneg %p198
        %p320 = pneg %p195
        %s321 = sand.u32 %s185, 1
        %s322 = scalar_lea.sflag [#allocation5], %s321
        %s323 = sand.u32 %s185, 1
        %s324 = smul.addr %s323, 16
        %s325 = scalar_lea.vmem [#allocation9], %s324
        %v326 = vld [vmem:[%s287] sm:$0xff]
        %v327 = vld [vmem:[%s287 + $0x8] sm:$0xff]
        %v328 = vld [vmem:[#allocation6] sm:$0xff]
        %v329 = vld [vmem:[#allocation6 + $0x8] sm:$0xff]
        %v330 = vld [vmem:[#allocation6 + $0x10] sm:$0xff]
        %v331 = vld [vmem:[#allocation6 + $0x18] sm:$0xff]
        %v332 = vld [vmem:[#allocation6 + $0x20] sm:$0xff]
        %v333 = vld [vmem:[#allocation6 + $0x28] sm:$0xff]
        %v334 = vld [vmem:[#allocation6 + $0x30] sm:$0xff]
        %v335 = vld [vmem:[#allocation6 + $0x38] sm:$0xff]
        %vm336 = vcmask 523264
        %v338 = vsel %vm336, %v326, 0
        %v341 = vsel %vm336, %v327, 0
        %343 = vmatprep.subr.mxu0 0.0
        %344 = vmatpush1.msra.mxu0 %v328
        %345 = vmatprep.subr.mxu0 0.0
        %346 = vmatpush1.msra.mxu0 %v329
        %347 = vmatprep.subr.mxu0 0.0
        %348 = vmatpush1.msra.mxu0 %v330
        %349 = vmatprep.subr.mxu0 0.0
        %350 = vmatpush1.msra.mxu0 %v331
        %351 = vmatprep.subr.mxu0 0.0
        %352 = vmatpush1.msra.mxu0 %v332
        %353 = vmatprep.subr.mxu0 0.0
        %354 = vmatpush1.msra.mxu0 %v333
        %355 = vmatprep.subr.mxu0 0.0
        %356 = vmatpush1.msra.mxu0 %v334
        %357 = vmatprep.subr.mxu0 0.0
        %358 = vmatpush1.msra.mxu0 %v335
        %359 = vmatprep.subr.mxu0 0.0
        %360 = vmatpush1.msra.mxu0 0.0
        %361 = vmatprep.subr.mxu0 0.0
        %362 = vmatpush1.msra.mxu0 0.0
        %363 = vmatprep.subr.mxu0 0.0
        %364 = vmatpush1.msra.mxu0 0.0
        %365 = vmatprep.subr.mxu0 0.0
        %366 = vmatpush1.msra.mxu0 0.0
        %367 = vmatprep.subr.mxu0 0.0
        %368 = vmatpush1.msra.mxu0 0.0
        %369 = vmatprep.subr.mxu0 0.0
        %370 = vmatpush1.msra.mxu0 0.0
        %371 = vmatprep.subr.mxu0 0.0
        %372 = vmatpush1.msra.mxu0 0.0
        %373 = vmatprep.subr.mxu0 0.0
        %374 = vmatpush1.msra.mxu0 0.0
        %375 = vmatprep.subr.mxu0 0.0
        %376 = vmatpush1.msra.mxu0 0.0
        %377 = vmatprep.subr.mxu0 0.0
        %378 = vmatpush1.msra.mxu0 0.0
        %379 = vmatprep.subr.mxu0 0.0
        %380 = vmatpush1.msra.mxu0 0.0
        %381 = vmatprep.subr.mxu0 0.0
        %382 = vmatpush1.msra.mxu0 0.0
        %383 = vmatprep.subr.mxu0 0.0
        %384 = vmatpush1.msra.mxu0 0.0
        %385 = vmatprep.subr.mxu0 0.0
        %386 = vmatpush1.msra.mxu0 0.0
        %387 = vmatprep.subr.mxu0 0.0
        %388 = vmatpush1.msra.mxu0 0.0
        %389 = vmatprep.subr.mxu0 0.0
        %390 = vmatpush1.msra.mxu0 0.0
        %391 = vmatprep.subr.mxu0 0.0
        %392 = vmatpush1.msra.mxu0 0.0
        %393 = vmatprep.subr.mxu0 0.0
        %394 = vmatpush1.msra.mxu0 0.0
        %395 = vmatprep.subr.mxu0 0.0
        %396 = vmatpush1.msra.mxu0 0.0
        %397 = vmatprep.subr.mxu0 0.0
        %398 = vmatpush1.msra.mxu0 0.0
        %399 = vmatprep.subr.mxu0 0.0
        %400 = vmatpush1.msra.mxu0 0.0
        %401 = vmatprep.subr.mxu0 0.0
        %402 = vmatpush1.msra.mxu0 0.0
        %403 = vmatprep.subr.mxu0 0.0
        %404 = vmatpush1.msra.mxu0 0.0
        %405 = vmatprep.subr.mxu0 0.0
        %406 = vmatpush1.msra.mxu0 0.0
        %407 = vmatprep.mubr.f32.mxu0 0.0
        %408 = vmatmul.mubr.f32.gmra.mrb[0].mxu0 %v338
        %v409 = vpop.f32.mrb[0].mxu0
        %v410 = vadd.f32 0.0, %v409
        %v411 = vpop.f32.mrb[0].mxu0
        %412 = vmatprep.mubr.f32.mxu0 0.0
        %413 = vmatmul.mubr.f32.gmra.mrb[0].mxu0 %v341
        %v414 = vpop.f32.mrb[0].mxu0
        %v415 = vadd.f32 0.0, %v414
        %v416 = vpop.f32.mrb[0].mxu0
        %417 = vdwg.mxu0
        %v418 = vld [vmem:[%s2] sm:$0x1]
        %v420 = vlaneseq
        %v421 = vshrl.u32 %v420, 7
        %v422 = vsub.s32 0, %v421
        %v423 = vrot.slane %v418, %v422
        %v425 = vmul.f32 %v410, %v423
        %v426 = vmul.f32 %v415, %v423
        %v427 = vld [vmem:[%s3] sm:$0x1]
        %v429 = vlaneseq
        %v430 = vshrl.u32 %v429, 7
        %v431 = vsub.s32 0, %v430
        %v432 = vrot.slane %v427, %v431
        %v434 = vadd.f32 %v425, %v432
        %v435 = vadd.f32 %v426, %v432
        %v436 = vxor.u32 %v434, 2147483648
        %v437 = vxor.u32 %v435, 2147483648
        %v438 = vmul.f32 %v436, 1.442695
        %v439 = vpow.pop %v438
        %v440 = vmul.f32 %v437, 1.442695
        %v441 = vpow.pop %v440
        %v442 = vadd.f32 %v439, 1.0
        %v443 = vadd.f32 %v441, 1.0
        %v444 = vrcp.pop %v442
        %v445 = vmul.f32 1.0, %v444
        %v446 = vrcp.pop %v443
        %v447 = vmul.f32 1.0, %v446
        %v448 = vmul.f32 %v434, %v445
        %v449 = vmul.f32 %v435, %v447
        %450 = vst.msk [vmem:[#allocation2] sm:$0xff] %vm336, 0.0
        %451 = vst.msk [vmem:[#allocation2 + $0x18] sm:$0xff] %vm336, 0.0
        %452 = vst.msk [vmem:[#allocation2 + $0x8] sm:$0xff] %vm336, %v448
        %453 = vst.msk [vmem:[#allocation2 + $0x10] sm:$0xff] %vm336, %v449
        %v454 = vld [vmem:[#allocation2 + $0x7] sm:$0xff]
        %v455 = vld [vmem:[#allocation2 + $0xf] sm:$0xff]
        %v456 = vld [vmem:[#allocation8] sm:$0xff]
        %v457 = vld [vmem:[#allocation8 + $0x8] sm:$0xff]
        %v458 = vld [vmem:[#allocation8 + $0x10] sm:$0xff]
        %v459 = vld [vmem:[#allocation8 + $0x18] sm:$0xff]
        %v460 = vld [vmem:[#allocation8 + $0x20] sm:$0xff]
        %v461 = vld [vmem:[#allocation8 + $0x28] sm:$0xff]
        %v462 = vld [vmem:[#allocation8 + $0x30] sm:$0xff]
        %v463 = vld [vmem:[#allocation8 + $0x38] sm:$0xff]
        %v464 = vld [vmem:[#allocation2 + $0x8] sm:$0xff]
        %v465 = vld [vmem:[#allocation2 + $0x10] sm:$0xff]
        %s466 = scalar_lea.vmem [#allocation8], 64
        %v467 = vld [vmem:[%s466] sm:$0xff]
        %v468 = vld [vmem:[%s466 + $0x8] sm:$0xff]
        %v469 = vld [vmem:[%s466 + $0x10] sm:$0xff]
        %v470 = vld [vmem:[%s466 + $0x18] sm:$0xff]
        %v471 = vld [vmem:[%s466 + $0x20] sm:$0xff]
        %v472 = vld [vmem:[%s466 + $0x28] sm:$0xff]
        %v473 = vld [vmem:[%s466 + $0x30] sm:$0xff]
        %v474 = vld [vmem:[%s466 + $0x38] sm:$0xff]
        %v476 = vsel %vm336, %v464, 0
        %v479 = vsel %vm336, %v465, 0
        %481 = vmatprep.subr.mxu0 0.0
        %482 = vmatpush1.msra.mxu0 %v467
        %483 = vmatprep.subr.mxu0 0.0
        %484 = vmatpush1.msra.mxu0 %v468
        %485 = vmatprep.subr.mxu0 0.0
        %486 = vmatpush1.msra.mxu0 %v469
        %487 = vmatprep.subr.mxu0 0.0
        %488 = vmatpush1.msra.mxu0 %v470
        %489 = vmatprep.subr.mxu0 0.0
        %490 = vmatpush1.msra.mxu0 %v471
        %491 = vmatprep.subr.mxu0 0.0
        %492 = vmatpush1.msra.mxu0 %v472
        %493 = vmatprep.subr.mxu0 0.0
        %494 = vmatpush1.msra.mxu0 %v473
        %495 = vmatprep.subr.mxu0 0.0
        %496 = vmatpush1.msra.mxu0 %v474
        %497 = vmatprep.subr.mxu0 0.0
        %498 = vmatpush1.msra.mxu0 0.0
        %499 = vmatprep.subr.mxu0 0.0
        %500 = vmatpush1.msra.mxu0 0.0
        %501 = vmatprep.subr.mxu0 0.0
        %502 = vmatpush1.msra.mxu0 0.0
        %503 = vmatprep.subr.mxu0 0.0
        %504 = vmatpush1.msra.mxu0 0.0
        %505 = vmatprep.subr.mxu0 0.0
        %506 = vmatpush1.msra.mxu0 0.0
        %507 = vmatprep.subr.mxu0 0.0
        %508 = vmatpush1.msra.mxu0 0.0
        %509 = vmatprep.subr.mxu0 0.0
        %510 = vmatpush1.msra.mxu0 0.0
        %511 = vmatprep.subr.mxu0 0.0
        %512 = vmatpush1.msra.mxu0 0.0
        %513 = vmatprep.subr.mxu0 0.0
        %514 = vmatpush1.msra.mxu0 0.0
        %515 = vmatprep.subr.mxu0 0.0
        %516 = vmatpush1.msra.mxu0 0.0
        %517 = vmatprep.subr.mxu0 0.0
        %518 = vmatpush1.msra.mxu0 0.0
        %519 = vmatprep.subr.mxu0 0.0
        %520 = vmatpush1.msra.mxu0 0.0
        %521 = vmatprep.subr.mxu0 0.0
        %522 = vmatpush1.msra.mxu0 0.0
        %523 = vmatprep.subr.mxu0 0.0
        %524 = vmatpush1.msra.mxu0 0.0
        %525 = vmatprep.subr.mxu0 0.0
        %526 = vmatpush1.msra.mxu0 0.0
        %527 = vmatprep.subr.mxu0 0.0
        %528 = vmatpush1.msra.mxu0 0.0
        %529 = vmatprep.subr.mxu0 0.0
        %530 = vmatpush1.msra.mxu0 0.0
        %531 = vmatprep.subr.mxu0 0.0
        %532 = vmatpush1.msra.mxu0 0.0
        %533 = vmatprep.subr.mxu0 0.0
        %534 = vmatpush1.msra.mxu0 0.0
        %535 = vmatprep.subr.mxu0 0.0
        %536 = vmatpush1.msra.mxu0 0.0
        %537 = vmatprep.subr.mxu0 0.0
        %538 = vmatpush1.msra.mxu0 0.0
        %539 = vmatprep.subr.mxu0 0.0
        %540 = vmatpush1.msra.mxu0 0.0
        %541 = vmatprep.subr.mxu0 0.0
        %542 = vmatpush1.msra.mxu0 0.0
        %543 = vmatprep.subr.mxu0 0.0
        %544 = vmatpush1.msra.mxu0 0.0
        %545 = vmatprep.mubr.f32.mxu0 0.0
        %546 = vmatmul.mubr.f32.gmra.mrb[0].mxu0 %v476
        %v547 = vpop.f32.mrb[0].mxu0
        %v548 = vadd.f32 0.0, %v547
        %v549 = vpop.f32.mrb[0].mxu0
        %550 = vmatprep.mubr.f32.mxu0 0.0
        %551 = vmatmul.mubr.f32.gmra.mrb[0].mxu0 %v479
        %v552 = vpop.f32.mrb[0].mxu0
        %v553 = vadd.f32 0.0, %v552
        %v554 = vpop.f32.mrb[0].mxu0
        %555 = vdwg.mxu0
        %v557 = vsel %vm336, %v454, 0
        %v560 = vsel %vm336, %v455, 0
        %562 = vmatprep.subr.mxu0 0.0
        %563 = vmatpush1.msra.mxu0 %v456
        %564 = vmatprep.subr.mxu0 0.0
        %565 = vmatpush1.msra.mxu0 %v457
        %566 = vmatprep.subr.mxu0 0.0
        %567 = vmatpush1.msra.mxu0 %v458
        %568 = vmatprep.subr.mxu0 0.0
        %569 = vmatpush1.msra.mxu0 %v459
        %570 = vmatprep.subr.mxu0 0.0
        %571 = vmatpush1.msra.mxu0 %v460
        %572 = vmatprep.subr.mxu0 0.0
        %573 = vmatpush1.msra.mxu0 %v461
        %574 = vmatprep.subr.mxu0 0.0
        %575 = vmatpush1.msra.mxu0 %v462
        %576 = vmatprep.subr.mxu0 0.0
        %577 = vmatpush1.msra.mxu0 %v463
        %578 = vmatprep.subr.mxu0 0.0
        %579 = vmatpush1.msra.mxu0 0.0
        %580 = vmatprep.subr.mxu0 0.0
        %581 = vmatpush1.msra.mxu0 0.0
        %582 = vmatprep.subr.mxu0 0.0
        %583 = vmatpush1.msra.mxu0 0.0
        %584 = vmatprep.subr.mxu0 0.0
        %585 = vmatpush1.msra.mxu0 0.0
        %586 = vmatprep.subr.mxu0 0.0
        %587 = vmatpush1.msra.mxu0 0.0
        %588 = vmatprep.subr.mxu0 0.0
        %589 = vmatpush1.msra.mxu0 0.0
        %590 = vmatprep.subr.mxu0 0.0
        %591 = vmatpush1.msra.mxu0 0.0
        %592 = vmatprep.subr.mxu0 0.0
        %593 = vmatpush1.msra.mxu0 0.0
        %594 = vmatprep.subr.mxu0 0.0
        %595 = vmatpush1.msra.mxu0 0.0
        %596 = vmatprep.subr.mxu0 0.0
        %597 = vmatpush1.msra.mxu0 0.0
        %598 = vmatprep.subr.mxu0 0.0
        %599 = vmatpush1.msra.mxu0 0.0
        %600 = vmatprep.subr.mxu0 0.0
        %601 = vmatpush1.msra.mxu0 0.0
        %602 = vmatprep.subr.mxu0 0.0
        %603 = vmatpush1.msra.mxu0 0.0
        %604 = vmatprep.subr.mxu0 0.0
        %605 = vmatpush1.msra.mxu0 0.0
        %606 = vmatprep.subr.mxu0 0.0
        %607 = vmatpush1.msra.mxu0 0.0
        %608 = vmatprep.subr.mxu0 0.0
        %609 = vmatpush1.msra.mxu0 0.0
        %610 = vmatprep.subr.mxu0 0.0
        %611 = vmatpush1.msra.mxu0 0.0
        %612 = vmatprep.subr.mxu0 0.0
        %613 = vmatpush1.msra.mxu0 0.0
        %614 = vmatprep.subr.mxu0 0.0
        %615 = vmatpush1.msra.mxu0 0.0
        %616 = vmatprep.subr.mxu0 0.0
        %617 = vmatpush1.msra.mxu0 0.0
        %618 = vmatprep.subr.mxu0 0.0
        %619 = vmatpush1.msra.mxu0 0.0
        %620 = vmatprep.subr.mxu0 0.0
        %621 = vmatpush1.msra.mxu0 0.0
        %622 = vmatprep.subr.mxu0 0.0
        %623 = vmatpush1.msra.mxu0 0.0
        %624 = vmatprep.subr.mxu0 0.0
        %625 = vmatpush1.msra.mxu0 0.0
        %626 = vmatprep.mubr.f32.mxu0 0.0
        %627 = vmatmul.mubr.f32.gmra.mrb[0].mxu0 %v557
        %v628 = vpop.f32.mrb[0].mxu0
        %v629 = vadd.f32 %v548, %v628
        %v630 = vpop.f32.mrb[0].mxu0
        %631 = vmatprep.mubr.f32.mxu0 0.0
        %632 = vmatmul.mubr.f32.gmra.mrb[0].mxu0 %v560
        %v633 = vpop.f32.mrb[0].mxu0
        %v634 = vadd.f32 %v553, %v633
        %v635 = vpop.f32.mrb[0].mxu0
        %636 = vdwg.mxu0
        %v637 = vld [vmem:[#allocation2 + $0x9] sm:$0xff]
        %v638 = vld [vmem:[#allocation2 + $0x11] sm:$0xff]
        %s639 = scalar_lea.vmem [#allocation8], 128
        %v640 = vld [vmem:[%s639] sm:$0xff]
        %v641 = vld [vmem:[%s639 + $0x8] sm:$0xff]
        %v642 = vld [vmem:[%s639 + $0x10] sm:$0xff]
        %v643 = vld [vmem:[%s639 + $0x18] sm:$0xff]
        %v644 = vld [vmem:[%s639 + $0x20] sm:$0xff]
        %v645 = vld [vmem:[%s639 + $0x28] sm:$0xff]
        %v646 = vld [vmem:[%s639 + $0x30] sm:$0xff]
        %v647 = vld [vmem:[%s639 + $0x38] sm:$0xff]
        %v649 = vsel %vm336, %v637, 0
        %v652 = vsel %vm336, %v638, 0
        %654 = vmatprep.subr.mxu0 0.0
        %655 = vmatpush1.msra.mxu0 %v640
        %656 = vmatprep.subr.mxu0 0.0
        %657 = vmatpush1.msra.mxu0 %v641
        %658 = vmatprep.subr.mxu0 0.0
        %659 = vmatpush1.msra.mxu0 %v642
        %660 = vmatprep.subr.mxu0 0.0
        %661 = vmatpush1.msra.mxu0 %v643
        %662 = vmatprep.subr.mxu0 0.0
        %663 = vmatpush1.msra.mxu0 %v644
        %664 = vmatprep.subr.mxu0 0.0
        %665 = vmatpush1.msra.mxu0 %v645
        %666 = vmatprep.subr.mxu0 0.0
        %667 = vmatpush1.msra.mxu0 %v646
        %668 = vmatprep.subr.mxu0 0.0
        %669 = vmatpush1.msra.mxu0 %v647
        %670 = vmatprep.subr.mxu0 0.0
        %671 = vmatpush1.msra.mxu0 0.0
        %672 = vmatprep.subr.mxu0 0.0
        %673 = vmatpush1.msra.mxu0 0.0
        %674 = vmatprep.subr.mxu0 0.0
        %675 = vmatpush1.msra.mxu0 0.0
        %676 = vmatprep.subr.mxu0 0.0
        %677 = vmatpush1.msra.mxu0 0.0
        %678 = vmatprep.subr.mxu0 0.0
        %679 = vmatpush1.msra.mxu0 0.0
        %680 = vmatprep.subr.mxu0 0.0
        %681 = vmatpush1.msra.mxu0 0.0
        %682 = vmatprep.subr.mxu0 0.0
        %683 = vmatpush1.msra.mxu0 0.0
        %684 = vmatprep.subr.mxu0 0.0
        %685 = vmatpush1.msra.mxu0 0.0
        %686 = vmatprep.subr.mxu0 0.0
        %687 = vmatpush1.msra.mxu0 0.0
        %688 = vmatprep.subr.mxu0 0.0
        %689 = vmatpush1.msra.mxu0 0.0
        %690 = vmatprep.subr.mxu0 0.0
        %691 = vmatpush1.msra.mxu0 0.0
        %692 = vmatprep.subr.mxu0 0.0
        %693 = vmatpush1.msra.mxu0 0.0
        %694 = vmatprep.subr.mxu0 0.0
        %695 = vmatpush1.msra.mxu0 0.0
        %696 = vmatprep.subr.mxu0 0.0
        %697 = vmatpush1.msra.mxu0 0.0
        %698 = vmatprep.subr.mxu0 0.0
        %699 = vmatpush1.msra.mxu0 0.0
        %700 = vmatprep.subr.mxu0 0.0
        %701 = vmatpush1.msra.mxu0 0.0
        %702 = vmatprep.subr.mxu0 0.0
        %703 = vmatpush1.msra.mxu0 0.0
        %704 = vmatprep.subr.mxu0 0.0
        %705 = vmatpush1.msra.mxu0 0.0
        %706 = vmatprep.subr.mxu0 0.0
        %707 = vmatpush1.msra.mxu0 0.0
        %708 = vmatprep.subr.mxu0 0.0
        %709 = vmatpush1.msra.mxu0 0.0
        %710 = vmatprep.subr.mxu0 0.0
        %711 = vmatpush1.msra.mxu0 0.0
        %712 = vmatprep.subr.mxu0 0.0
        %713 = vmatpush1.msra.mxu0 0.0
        %714 = vmatprep.subr.mxu0 0.0
        %715 = vmatpush1.msra.mxu0 0.0
        %716 = vmatprep.subr.mxu0 0.0
        %717 = vmatpush1.msra.mxu0 0.0
        %718 = vmatprep.mubr.f32.mxu0 0.0
        %719 = vmatmul.mubr.f32.gmra.mrb[0].mxu0 %v649
        %v720 = vpop.f32.mrb[0].mxu0
        %v721 = vadd.f32 0.0, %v720
        %v722 = vpop.f32.mrb[0].mxu0
        %723 = vmatprep.mubr.f32.mxu0 0.0
        %724 = vmatmul.mubr.f32.gmra.mrb[0].mxu0 %v652
        %v725 = vpop.f32.mrb[0].mxu0
        %v726 = vadd.f32 0.0, %v725
        %v727 = vpop.f32.mrb[0].mxu0
        %728 = vdwg.mxu0
        %v729 = vadd.f32 %v629, %v721
        %v730 = vadd.f32 %v634, %v726
        %v731 = vld [vmem:[%s5] sm:$0x1]
        %v733 = vlaneseq
        %v734 = vshrl.u32 %v733, 7
        %v735 = vsub.s32 0, %v734
        %v736 = vrot.slane %v731, %v735
        %v738 = vmul.f32 %v729, %v736
        %v739 = vmul.f32 %v730, %v736
        %v740 = vld [vmem:[%s6] sm:$0x1]
        %v742 = vlaneseq
        %v743 = vshrl.u32 %v742, 7
        %v744 = vsub.s32 0, %v743
        %v745 = vrot.slane %v740, %v744
        %v747 = vadd.f32 %v738, %v745
        %v748 = vadd.f32 %v739, %v745
        %v749 = vxor.u32 %v747, 2147483648
        %v750 = vxor.u32 %v748, 2147483648
        %v751 = vmul.f32 %v749, 1.442695
        %v752 = vpow.pop %v751
        %v753 = vmul.f32 %v750, 1.442695
        %v754 = vpow.pop %v753
        %v755 = vadd.f32 %v752, 1.0
        %v756 = vadd.f32 %v754, 1.0
        %v757 = vrcp.pop %v755
        %v758 = vmul.f32 1.0, %v757
        %v759 = vrcp.pop %v756
        %v760 = vmul.f32 1.0, %v759
        %v761 = vmul.f32 %v747, %v758
        %v762 = vmul.f32 %v748, %v760
        %763 = vst.msk [vmem:[%s325] sm:$0xff] %vm336, %v761
        %764 = vst.msk [vmem:[%s325 + $0x8] sm:$0xff] %vm336, %v762
        %s765 = sand.u32 %s185, 1
        %s766 = scalar_lea.sflag [#allocation5], %s765
        %s767 = sand.u32 %s185, 1
        %s768 = smul.addr %s767, 16
        %s769 = scalar_lea.vmem [#allocation9], %s768
        // Predicated region
        $region61: #{tpu_custom_call.1} parent=47 // pred_check
          %p770 = pneg %p195
        $region62: #{tpu_custom_call.1} parent=47 // pred_check_branch
          %772 = sbr.rel (%p770) target = $region64
        $region63: #{tpu_custom_call.1} parent=47 // pred_region
          %s774 = ssub.s32 256, 256
          %775 = vsyncadd %s766, %s774
          %s776 = smul.addr %s25, 2
          %s777 = smul.addr %s776, 128
          %s778 = scalar_lea.hbm %s7, %s777
          %s779 = sshll.u32 %s769, 4
          %s780 = int_to_ptr.vmem [resolvable:$true] %s779
          %785 = dma.vmem_to_hbm [thread:$0]  %s780, 256, %s778, %s766, 128, 128, 8
        $region64: #{tpu_custom_call.1} parent=47 // pred_fallthru
          _
      $region48: #{tpu_custom_call.1} parent=5 // pred_fallthru
        _
      %p786 = scmp.le.s32.totalorder 2, %s20
      // Predicated region
      $region65: #{tpu_custom_call.1} parent=5 // pred_check
        %p787 = pneg %p786
      $region66: #{tpu_custom_call.1} parent=5 // pred_check_branch
        %789 = sbr.rel (%p787) target = $region68
      $region67: #{tpu_custom_call.1} parent=5 // pred_region
        %s790 = ssub.s32 %s20, 2
        // Predicated region
        $region69: #{tpu_custom_call.1} parent=67 // pred_check
          %p791 = pneg %p201
        $region70: #{tpu_custom_call.1} parent=67 // pred_check_branch
          %793 = sbr.rel (%p791) target = $region72
        $region71: #{tpu_custom_call.1} parent=67 // pred_region
          %s794 = sand.u32 %s186, 1
          %s795 = scalar_lea.sflag [#allocation5], %s794
          %s796 = sand.u32 %s186, 1
          %s797 = smul.addr %s796, 16
          %s798 = scalar_lea.vmem [#allocation9], %s797
          %799 = dma.done %s795, 256
        $region72: #{tpu_custom_call.1} parent=67 // pred_fallthru
          _
      $region68: #{tpu_custom_call.1} parent=5 // pred_fallthru
        _
    $region6: #{tpu_custom_call.1} parent=1 // loop_footer
      %s24 = sadd.s32 1, %s20
    $region7: #{tpu_custom_call.1} parent=1 // loop_footer_branch
      %19 = sbr.rel target = $region3
    $region8: #{tpu_custom_call.1} parent=1 // loop_exit
      _
    %800 = vsyncpa [#allocation4], 1
    %s801 = scalar_lea.sflag [#allocation4], 1
    %802 = vsyncpa %s801, 1
    %803 = vsyncpa [#allocation7], 1
    %804 = vsyncpa [#allocation5], 1
    %s805 = scalar_lea.sflag [#allocation5], 1
    %806 = vsyncpa %s805, 1

</llo_original>
